<compile_context>
chip_gen: v7x
topology: tpu7x:2x2x1
jax: 0.10.0
libtpu: 0.0.40
codegen_flags: <defaults>
</compile_context>

<pallas_src>
import math
from functools import partial

import jax
import jax.numpy as jnp
from jax.experimental import pallas as pl
from jax.experimental.pallas import tpu as pltpu

IN_DIM = 300          # logical input features (first matmul K, unpadded)
HID_DIM = 300         # logical hidden features
OUT_DIM = 128         # logical output features
HID_PAD = 384         # hidden dim padded up to a multiple of 128 lanes
TB_MAX = 1024         # max batch-tile rows (multiple of 16 for bf16 packing)


def _round_up(n, m):
    return ((n + m - 1) // m) * m


def _supports_bf16_activations():
    """bf16 VPU/EUP exists on v6e/v7x; v5e must keep activation math in f32."""
    try:
        kind = jax.devices()[0].device_kind.lower()
    except Exception:
        return False
    return ("v6" in kind) or ("v7" in kind)


def forward_net_kernel(x_ref, w1_ref, b1_ref, w2_ref, b2_ref, o_ref, *, bf16_act):
    # Cast raw f32 x to bf16 in-kernel (saves a whole HBM pass in the wrapper).
    x = x_ref[...].astype(jnp.bfloat16)
    # Layer 1: (TB, 300)bf16 @ (300, 384)bf16 -> f32 accumulate.
    h = jnp.dot(x, w1_ref[...], preferred_element_type=jnp.float32)
    h = h + b1_ref[...]
    if bf16_act:
        # v6e/v7x: bf16 EUP tanh halves transcendental cost and h footprint.
        h = jnp.tanh(h.astype(jnp.bfloat16))
    else:
        # v5e: no bf16 VPU/EUP -> keep tanh in f32, cast only for the MXU.
        h = jnp.tanh(h).astype(jnp.bfloat16)
    # Layer 2: (TB, 384)bf16 @ (384, 128)bf16 -> f32 accumulate, bias, tanh.
    o = jnp.dot(h, w2_ref[...], preferred_element_type=jnp.float32)
    o_ref[...] = jnp.tanh(o + b2_ref[...]).astype(o_ref.dtype)


def prepare_params(w1, b1, w2, b2):
    """Pad hidden dims to 384 and cast matmul operands to bf16 (done once).

    w1: (IN_DIM, HID_DIM) -> (IN_DIM, HID_PAD) bf16   (K left unpadded)
    b1: (1, HID_DIM)      -> (1, HID_PAD)     f32
    w2: (HID_DIM, OUT_DIM)-> (HID_PAD, OUT_DIM) bf16
    b2: (1, OUT_DIM)      -> (1, OUT_DIM)     f32
    """
    w1p = jnp.zeros((IN_DIM, HID_PAD), jnp.bfloat16)
    w1p = w1p.at[:, :HID_DIM].set(w1.astype(jnp.bfloat16))
    b1p = jnp.zeros((1, HID_PAD), jnp.float32).at[:, :HID_DIM].set(
        b1.astype(jnp.float32))
    w2p = jnp.zeros((HID_PAD, OUT_DIM), jnp.bfloat16)
    w2p = w2p.at[:HID_DIM, :].set(w2.astype(jnp.bfloat16))   # fixed: HID_DIM
    b2p = b2.astype(jnp.float32).reshape(1, OUT_DIM)
    return w1p, b1p, w2p, b2p


def forward_net(x, w1p, b1p, w2p, b2p, out_dtype=None):
    """x: (B, 300) float array. Params must come from prepare_params().

    out_dtype: pass jnp.bfloat16 if the consumer tolerates it (halves output
    writeback); defaults to x.dtype to match the PyTorch module's semantics.
    """
    B, F = x.shape
    assert F == IN_DIM, f"expected {IN_DIM} input features, got {F}"
    if out_dtype is None:
        out_dtype = x.dtype

    # --- batch-tile selection ------------------------------------------------
    if B <= 16:
        TB = _round_up(B, 8)                       # single small block
    else:
        B_ru = _round_up(B, 16)
        if B_ru <= TB_MAX:
            # >= 2 grid steps so v7x's second TensorCore gets work.
            TB = min(TB_MAX, _round_up(pl.cdiv(B_ru, 2), 16))
        else:
            TB = TB_MAX
    grid = (pl.cdiv(B, TB),)                       # ragged last block is fine:
                                                   # OOB reads discarded rows,
                                                   # OOB writes masked.

    bf16_act = _supports_bf16_activations()
    kernel = partial(forward_net_kernel, bf16_act=bf16_act)

    cost = pl.CostEstimate(
        flops=2 * B * (IN_DIM * HID_PAD + HID_PAD * OUT_DIM),
        transcendentals=B * (HID_PAD + OUT_DIM),
        bytes_accessed=(
            B * IN_DIM * x.dtype.itemsize                        # raw x read
            + IN_DIM * HID_PAD * 2 + HID_PAD * OUT_DIM * 2       # bf16 weights
            + (HID_PAD + OUT_DIM) * 4                            # f32 biases
            + B * OUT_DIM * jnp.dtype(out_dtype).itemsize        # output
        ),
    )

    out = pl.pallas_call(
        kernel,
        out_shape=jax.ShapeDtypeStruct((B, OUT_DIM), out_dtype),
        grid=grid,
        in_specs=[
            # x: one batch tile per grid step (auto double-buffered);
            # last dim = 300 = full array dim (legal even though < 128-aligned).
            pl.BlockSpec((TB, IN_DIM), lambda i: (i, 0)),
            # Weights / biases: constant index_map -> VMEM-resident, no re-DMA.
            pl.BlockSpec((IN_DIM, HID_PAD), lambda i: (0, 0)),
            pl.BlockSpec((1, HID_PAD), lambda i: (0, 0)),
            pl.BlockSpec((HID_PAD, OUT_DIM), lambda i: (0, 0)),
            pl.BlockSpec((1, OUT_DIM), lambda i: (0, 0)),
        ],
        out_specs=pl.BlockSpec((TB, OUT_DIM), lambda i: (i, 0)),
        compiler_params=pltpu.CompilerParams(
            dimension_semantics=("parallel",),   # lets v7x shard across 2 TCs
        ),
        cost_estimate=cost,
    )(x, w1p, b1p, w2p, b2p)

    return out


def init_params(key):
    """Deterministic init matching nn.Linear + xavier_uniform_ semantics.

    Weights: xavier uniform over (out, in), stored transposed as (in, out), f32.
    Biases:  PyTorch Linear default U(-1/sqrt(fan_in), 1/sqrt(fan_in)), f32.
    """
    k1, k2, k3, k4 = jax.random.split(key, 4)

    def xavier(k, fan_in, fan_out):
        limit = math.sqrt(6.0 / (fan_in + fan_out))
        w = jax.random.uniform(
            k, (fan_out, fan_in), jnp.float32, minval=-limit, maxval=limit
        )
        return w.T  # (in, out)

    def bias(k, fan_in, fan_out):
        bound = 1.0 / math.sqrt(fan_in)
        return jax.random.uniform(
            k, (1, fan_out), jnp.float32, minval=-bound, maxval=bound
        )

    w1 = xavier(k1, IN_DIM, HID_DIM)    # (300, 300)
    b1 = bias(k2, IN_DIM, HID_DIM)      # (1, 300)
    w2 = xavier(k3, HID_DIM, OUT_DIM)   # (300, 128)
    b2 = bias(k4, HID_DIM, OUT_DIM)     # (1, 128)
    return w1, b1, w2, b2


if __name__ == "__main__":
    key = jax.random.PRNGKey(0)
    k_x, k_p = jax.random.split(key)

    w1, b1, w2, b2 = init_params(k_p)
    params = prepare_params(w1, b1, w2, b2)

    def reference(x):
        # Pure-JAX f32 reference (tolerance loosened for bf16 matmul inputs).
        return jnp.tanh(jnp.tanh(x @ w1 + b1) @ w2 + b2)

    # B=8 exercises the single-block path; B=64 exercises the 2-step
    # megacore-friendly grid (TB=32, grid=(2,)).
    for B in (8, 64):
        x = jax.random.normal(jax.random.fold_in(k_x, B), (B, IN_DIM),
                              jnp.float32)
        out = jax.block_until_ready(forward_net(x, *params))
        ref = reference(x)
        assert out.shape == (B, OUT_DIM)
        err = float(jnp.max(jnp.abs(out.astype(jnp.float32) - ref)))
        assert err < 3e-2, err

    print("KERNEL_OK")
</pallas_src>

<mosaic_0001>
module attributes {stable_mosaic.version = 11 : i64} {
  func.func @forward_net_kernel(%arg0: i32, %arg1: memref<8x300xf32, #tpu.memory_space<vmem>>, %arg2: memref<300x384xbf16, #tpu.memory_space<vmem>>, %arg3: memref<1x384xf32, #tpu.memory_space<vmem>>, %arg4: memref<384x128xbf16, #tpu.memory_space<vmem>>, %arg5: memref<1x128xf32, #tpu.memory_space<vmem>>, %arg6: memref<8x128xf32, #tpu.memory_space<vmem>>) attributes {dimension_semantics = [#tpu.dimension_semantics<parallel>], iteration_bounds = array<i64: 1>, scalar_prefetch = 0 : i64, scratch_operands = 0 : i64, tpu.core_type = #tpu.core_type<tc>, window_params = [{transform_indices = @transform_0, window_bounds = array<i64: 8, 300>}, {pipeline_mode = #tpu.pipeline_mode<synchronous>, transform_indices = @transform_1, window_bounds = array<i64: 300, 384>}, {pipeline_mode = #tpu.pipeline_mode<synchronous>, transform_indices = @transform_2, window_bounds = array<i64: 1, 384>}, {pipeline_mode = #tpu.pipeline_mode<synchronous>, transform_indices = @transform_3, window_bounds = array<i64: 384, 128>}, {pipeline_mode = #tpu.pipeline_mode<synchronous>, transform_indices = @transform_4, window_bounds = array<i64: 1, 128>}, {transform_indices = @transform_5, window_bounds = array<i64: 8, 128>}]} {
    %c0 = arith.constant 0 : index
    %c0_0 = arith.constant 0 : index
    %0 = vector.load %arg1[%c0, %c0_0] : memref<8x300xf32, #tpu.memory_space<vmem>>, vector<8x300xf32>
    %1 = arith.truncf %0 : vector<8x300xf32> to vector<8x300xbf16>
    %c0_1 = arith.constant 0 : index
    %c0_2 = arith.constant 0 : index
    %2 = vector.load %arg2[%c0_1, %c0_2] : memref<300x384xbf16, #tpu.memory_space<vmem>>, vector<300x384xbf16>
    %cst = arith.constant dense<0.000000e+00> : vector<8x384xf32>
    %3 = tpu.matmul %1, %2, %cst {dimension_numbers = #tpu.dot_dimension_numbers<[1], [0], [0], [1], [0, 0, 1, 1], [], []>} : vector<8x300xbf16>, vector<300x384xbf16>, vector<8x384xf32> -> vector<8x384xf32>
    %c0_3 = arith.constant 0 : index
    %c0_4 = arith.constant 0 : index
    %4 = vector.load %arg3[%c0_3, %c0_4] : memref<1x384xf32, #tpu.memory_space<vmem>>, vector<1x384xf32>
    %5 = vector.broadcast %4 : vector<1x384xf32> to vector<8x384xf32>
    %6 = arith.addf %3, %5 : vector<8x384xf32>
    %7 = math.tanh %6 : vector<8x384xf32>
    %8 = arith.truncf %7 : vector<8x384xf32> to vector<8x384xbf16>
    %c0_5 = arith.constant 0 : index
    %c0_6 = arith.constant 0 : index
    %9 = vector.load %arg4[%c0_5, %c0_6] : memref<384x128xbf16, #tpu.memory_space<vmem>>, vector<384x128xbf16>
    %cst_7 = arith.constant dense<0.000000e+00> : vector<8x128xf32>
    %10 = tpu.matmul %8, %9, %cst_7 {dimension_numbers = #tpu.dot_dimension_numbers<[1], [0], [0], [1], [0, 0, 1, 1], [], []>} : vector<8x384xbf16>, vector<384x128xbf16>, vector<8x128xf32> -> vector<8x128xf32>
    %c0_8 = arith.constant 0 : index
    %c0_9 = arith.constant 0 : index
    %11 = vector.load %arg5[%c0_8, %c0_9] : memref<1x128xf32, #tpu.memory_space<vmem>>, vector<1x128xf32>
    %12 = vector.broadcast %11 : vector<1x128xf32> to vector<8x128xf32>
    %13 = arith.addf %10, %12 : vector<8x128xf32>
    %14 = math.tanh %13 : vector<8x128xf32>
    %c0_10 = arith.constant 0 : index
    %c0_11 = arith.constant 0 : index
    %15 = vector.load %arg6[%c0_10, %c0_11] : memref<8x128xf32, #tpu.memory_space<vmem>>, vector<8x128xf32>
    tpu.vector_store %arg6[%c0_10, %c0_11], %14 {strides = array<i32>} : memref<8x128xf32, #tpu.memory_space<vmem>>, vector<8x128xf32>,
    return
  }
  func.func @transform_0(%arg0: i32) -> (i32, i32) {
    %c0_i32 = arith.constant 0 : i32
    %c0_i32_0 = arith.constant 0 : i32
    return %arg0, %c0_i32 : i32, i32
  }
  func.func @transform_1(%arg0: i32) -> (i32, i32) {
    %c0_i32 = arith.constant 0 : i32
    %c0_i32_0 = arith.constant 0 : i32
    %c0_i32_1 = arith.constant 0 : i32
    return %c0_i32, %c0_i32_0 : i32, i32
  }
  func.func @transform_2(%arg0: i32) -> (i32, i32) {
    %c0_i32 = arith.constant 0 : i32
    %c0_i32_0 = arith.constant 0 : i32
    %c0_i32_1 = arith.constant 0 : i32
    return %c0_i32, %c0_i32_0 : i32, i32
  }
  func.func @transform_3(%arg0: i32) -> (i32, i32) {
    %c0_i32 = arith.constant 0 : i32
    %c0_i32_0 = arith.constant 0 : i32
    %c0_i32_1 = arith.constant 0 : i32
    return %c0_i32, %c0_i32_0 : i32, i32
  }
  func.func @transform_4(%arg0: i32) -> (i32, i32) {
    %c0_i32 = arith.constant 0 : i32
    %c0_i32_0 = arith.constant 0 : i32
    %c0_i32_1 = arith.constant 0 : i32
    return %c0_i32, %c0_i32_0 : i32, i32
  }
  func.func @transform_5(%arg0: i32) -> (i32, i32) {
    %c0_i32 = arith.constant 0 : i32
    %c0_i32_0 = arith.constant 0 : i32
    return %arg0, %c0_i32 : i32, i32
  }
}

</mosaic_0001>

<llo_original>
// kernel: tpu_custom_call.1
$region0: #{tpu_custom_call.1}
  #allocation0 [shape = 'u32[]', space=smem, size = 0x4, offset = 0x4, fixed_abs, tag = 'smem constant byte address 0x4 - core index']
  #allocation1 [shape = 'u32[144,128]{1,0:T(1,128)}', space=vmem, size = 0x12000, scoped, tag = 'internal scratch']
  %s0 = inlined_call_operand.hbm [shape: f32[8,300], index: 0, kind: input, shape index: {}]
  %s1 = inlined_call_operand.hbm [shape: bf16[300,384], index: 1, kind: input, shape index: {}]
  %s2 = inlined_call_operand.vmem [shape: f32[1,384], index: 2, kind: input, shape index: {}]
  %s3 = inlined_call_operand.hbm [shape: bf16[384,128], index: 3, kind: input, shape index: {}]
  %s4 = inlined_call_operand.vmem [shape: f32[1,128], index: 4, kind: input, shape index: {}]
  %s5 = inlined_call_operand.hbm [shape: f32[8,128], index: 5, kind: output, shape index: {}]
  %s6 = sld [smem:[#allocation0]]
  $region42: #{tpu_custom_call.1} parent=0
    _
  %s8 = ssub.s32 1, %s6
  %s9 = scalar_select 0, %s8, %s6
  $region1: #{tpu_custom_call.1} parent=0
    #allocation2 [shape = 'u8[12288]{0}', space=vmem, size = 0x3000, scoped, tag = 'input window, operand 0, single buffered']
    #allocation3 [shape = 's32[1]{0}', space=sflag, size = 0x4, scoped, tag = 'scoped memory for tpu_custom_call.1']
    #allocation4 [shape = 's32[1]{0}', space=sflag, size = 0x4, scoped, tag = 'scoped memory for tpu_custom_call.1']
    #allocation5 [shape = 'u8[233472]{0}', space=vmem, size = 0x39000, scoped, tag = 'input window, operand 1, single buffered']
    #allocation6 [shape = 's32[1]{0}', space=sflag, size = 0x4, scoped, tag = 'scoped memory for tpu_custom_call.1']
    #allocation7 [shape = 'u8[98304]{0}', space=vmem, size = 0x18000, scoped, tag = 'input window, operand 3, single buffered']
    #allocation8 [shape = 'u8[4096]{0}', space=vmem, size = 0x1000, scoped, tag = 'output window, operand 0, single buffered']
    %10 = vsyncpa [#allocation3], 0
    %11 = vsyncpa [#allocation6], 0
    %12 = vsyncpa [#allocation4], 0
    // Predicated region
    $region2: #{tpu_custom_call.1} parent=1 // pred_check
      _
    $region3: #{tpu_custom_call.1} parent=1 // pred_check_branch
      %14 = sbr.rel (0) target = $region5
    $region4: #{tpu_custom_call.1} parent=1 // pred_region
      %s16 = ssub.s32 384, 384
      %17 = vsyncadd [#allocation3], %s16
      %s19 = sshll.u32 [#allocation2], 4
      %s20 = int_to_ptr.vmem [resolvable:$true] %s19
      %22 = dma.hbm_to_vmem [thread:$0]  %s0, 384, %s20, [#allocation3]
    $region5: #{tpu_custom_call.1} parent=1 // pred_fallthru
      _
    // Predicated region
    $region6: #{tpu_custom_call.1} parent=1 // pred_check
      _
    $region7: #{tpu_custom_call.1} parent=1 // pred_check_branch
      %24 = sbr.rel (0) target = $region9
    $region8: #{tpu_custom_call.1} parent=1 // pred_region
      %s26 = ssub.s32 7296, 7296
      %27 = vsyncadd [#allocation6], %s26
      %s28 = sshll.u32 [#allocation5], 4
      %s29 = int_to_ptr.vmem [resolvable:$true] %s28
      %34 = dma.hbm_to_vmem [thread:$0]  %s1, 7296, %s29, [#allocation6], 192, 192, 12
    $region9: #{tpu_custom_call.1} parent=1 // pred_fallthru
      _
    // Predicated region
    $region10: #{tpu_custom_call.1} parent=1 // pred_check
      _
    $region11: #{tpu_custom_call.1} parent=1 // pred_check_branch
      %36 = sbr.rel (0) target = $region13
    $region12: #{tpu_custom_call.1} parent=1 // pred_region
      _
    $region13: #{tpu_custom_call.1} parent=1 // pred_fallthru
      _
    // Predicated region
    $region14: #{tpu_custom_call.1} parent=1 // pred_check
      _
    $region15: #{tpu_custom_call.1} parent=1 // pred_check_branch
      %38 = sbr.rel (0) target = $region17
    $region16: #{tpu_custom_call.1} parent=1 // pred_region
      %s40 = ssub.s32 3072, 3072
      %41 = vsyncadd [#allocation6], %s40
      %s42 = sshll.u32 [#allocation7], 4
      %s43 = int_to_ptr.vmem [resolvable:$true] %s42
      %48 = dma.hbm_to_vmem [thread:$0]  %s3, 3072, %s43, [#allocation6], 64, 64, 4
    $region17: #{tpu_custom_call.1} parent=1 // pred_fallthru
      _
    // Predicated region
    $region18: #{tpu_custom_call.1} parent=1 // pred_check
      _
    $region19: #{tpu_custom_call.1} parent=1 // pred_check_branch
      %50 = sbr.rel (0) target = $region21
    $region20: #{tpu_custom_call.1} parent=1 // pred_region
      _
    $region21: #{tpu_custom_call.1} parent=1 // pred_fallthru
      _
    // Predicated region
    $region22: #{tpu_custom_call.1} parent=1 // pred_check
      _
    $region23: #{tpu_custom_call.1} parent=1 // pred_check_branch
      %52 = sbr.rel (0) target = $region25
    $region24: #{tpu_custom_call.1} parent=1 // pred_region
      %53 = dma.done [#allocation3], 384
    $region25: #{tpu_custom_call.1} parent=1 // pred_fallthru
      _
    // Predicated region
    $region26: #{tpu_custom_call.1} parent=1 // pred_check
      _
    $region27: #{tpu_custom_call.1} parent=1 // pred_check_branch
      %55 = sbr.rel (0) target = $region29
    $region28: #{tpu_custom_call.1} parent=1 // pred_region
      %56 = dma.done [#allocation6], 7296
    $region29: #{tpu_custom_call.1} parent=1 // pred_fallthru
      _
    // Predicated region
    $region30: #{tpu_custom_call.1} parent=1 // pred_check
      _
    $region31: #{tpu_custom_call.1} parent=1 // pred_check_branch
      %58 = sbr.rel (0) target = $region33
    $region32: #{tpu_custom_call.1} parent=1 // pred_region
      %59 = dma.done [#allocation6], 3072
    $region33: #{tpu_custom_call.1} parent=1 // pred_fallthru
      _
    %v61 = vld [vmem:[#allocation2] sm:$0xff]
    %v62 = vld [vmem:[#allocation2 + $0x8] sm:$0xff]
    %v63 = vld [vmem:[#allocation2 + $0x10] sm:$0xff]
    %v64 = vpack.c.bf16 %v61, %v61
    %v65 = vpack.c.bf16 %v62, %v62
    %v66 = vpack.c.bf16 %v63, %v63
    %v67 = vld [vmem:[#allocation5] sm:$0xff]
    %v68 = vld [vmem:[#allocation5 + $0x8] sm:$0xf]
    %v69 = vld [vmem:[#allocation5 + $0xc] sm:$0xff]
    %v70 = vld [vmem:[#allocation5 + $0x14] sm:$0xf]
    %v71 = vld [vmem:[#allocation5 + $0x18] sm:$0xff]
    %v72 = vld [vmem:[#allocation5 + $0x20] sm:$0xf]
    %v73 = vld [vmem:[#allocation5 + $0x24] sm:$0xff]
    %v74 = vld [vmem:[#allocation5 + $0x2c] sm:$0xf]
    %v75 = vld [vmem:[#allocation5 + $0x30] sm:$0xff]
    %v76 = vld [vmem:[#allocation5 + $0x38] sm:$0xf]
    %v77 = vld [vmem:[#allocation5 + $0x3c] sm:$0xff]
    %v78 = vld [vmem:[#allocation5 + $0x44] sm:$0xf]
    %v79 = vld [vmem:[#allocation5 + $0x48] sm:$0xff]
    %v80 = vld [vmem:[#allocation5 + $0x50] sm:$0xf]
    %v81 = vld [vmem:[#allocation5 + $0x54] sm:$0xff]
    %v82 = vld [vmem:[#allocation5 + $0x5c] sm:$0xf]
    %v83 = vld [vmem:[#allocation5 + $0x60] sm:$0xff]
    %v84 = vld [vmem:[#allocation5 + $0x68] sm:$0xf]
    %v85 = vld [vmem:[#allocation5 + $0x6c] sm:$0xff]
    %v86 = vld [vmem:[#allocation5 + $0x74] sm:$0xf]
    %v87 = vld [vmem:[#allocation5 + $0x78] sm:$0xff]
    %v88 = vld [vmem:[#allocation5 + $0x80] sm:$0xf]
    %v89 = vld [vmem:[#allocation5 + $0x84] sm:$0xff]
    %v90 = vld [vmem:[#allocation5 + $0x8c] sm:$0xf]
    %v91 = vld [vmem:[#allocation5 + $0x90] sm:$0xff]
    %v92 = vld [vmem:[#allocation5 + $0x98] sm:$0xf]
    %v93 = vld [vmem:[#allocation5 + $0x9c] sm:$0xff]
    %v94 = vld [vmem:[#allocation5 + $0xa4] sm:$0xf]
    %v95 = vld [vmem:[#allocation5 + $0xa8] sm:$0xff]
    %v96 = vld [vmem:[#allocation5 + $0xb0] sm:$0xf]
    %v97 = vld [vmem:[#allocation5 + $0xb4] sm:$0xff]
    %v98 = vld [vmem:[#allocation5 + $0xbc] sm:$0xf]
    %v99 = vld [vmem:[#allocation5 + $0xc0] sm:$0xff]
    %v100 = vld [vmem:[#allocation5 + $0xc8] sm:$0xf]
    %v101 = vld [vmem:[#allocation5 + $0xcc] sm:$0xff]
    %v102 = vld [vmem:[#allocation5 + $0xd4] sm:$0xf]
    %v103 = vld [vmem:[#allocation5 + $0xd8] sm:$0xff]
    %v104 = vld [vmem:[#allocation5 + $0xe0] sm:$0xf]
    %v105 = vld [vmem:[#allocation5 + $0xe4] sm:$0xff]
    %v106 = vld [vmem:[#allocation5 + $0xec] sm:$0xf]
    %v107 = vld [vmem:[#allocation5 + $0xf0] sm:$0xff]
    %v108 = vld [vmem:[#allocation5 + $0xf8] sm:$0xf]
    %v109 = vld [vmem:[#allocation5 + $0xfc] sm:$0xff]
    %v110 = vld [vmem:[#allocation5 + $0x104] sm:$0xf]
    %v111 = vld [vmem:[#allocation5 + $0x108] sm:$0xff]
    %v112 = vld [vmem:[#allocation5 + $0x110] sm:$0xf]
    %v113 = vld [vmem:[#allocation5 + $0x114] sm:$0xff]
    %v114 = vld [vmem:[#allocation5 + $0x11c] sm:$0xf]
    %v115 = vld [vmem:[#allocation5 + $0x120] sm:$0xff]
    %v116 = vld [vmem:[#allocation5 + $0x128] sm:$0xf]
    %v117 = vld [vmem:[#allocation5 + $0x12c] sm:$0xff]
    %v118 = vld [vmem:[#allocation5 + $0x134] sm:$0xf]
    %v119 = vld [vmem:[#allocation5 + $0x138] sm:$0xff]
    %v120 = vld [vmem:[#allocation5 + $0x140] sm:$0xf]
    %v121 = vld [vmem:[#allocation5 + $0x144] sm:$0xff]
    %v122 = vld [vmem:[#allocation5 + $0x14c] sm:$0xf]
    %v123 = vld [vmem:[#allocation5 + $0x150] sm:$0xff]
    %v124 = vld [vmem:[#allocation5 + $0x158] sm:$0xf]
    %v125 = vld [vmem:[#allocation5 + $0x15c] sm:$0xff]
    %v126 = vld [vmem:[#allocation5 + $0x164] sm:$0xf]
    %v127 = vld [vmem:[#allocation5 + $0x168] sm:$0xff]
    %v128 = vld [vmem:[#allocation5 + $0x170] sm:$0xf]
    %v129 = vld [vmem:[#allocation5 + $0x174] sm:$0xff]
    %v130 = vld [vmem:[#allocation5 + $0x17c] sm:$0xf]
    %v131 = vld [vmem:[#allocation5 + $0x180] sm:$0xff]
    %v132 = vld [vmem:[#allocation5 + $0x188] sm:$0xf]
    %v133 = vld [vmem:[#allocation5 + $0x18c] sm:$0xff]
    %v134 = vld [vmem:[#allocation5 + $0x194] sm:$0xf]
    %v135 = vld [vmem:[#allocation5 + $0x198] sm:$0xff]
    %v136 = vld [vmem:[#allocation5 + $0x1a0] sm:$0xf]
    %v137 = vld [vmem:[#allocation5 + $0x1a4] sm:$0xff]
    %v138 = vld [vmem:[#allocation5 + $0x1ac] sm:$0xf]
    %v139 = vld [vmem:[#allocation5 + $0x1b0] sm:$0xff]
    %v140 = vld [vmem:[#allocation5 + $0x1b8] sm:$0xf]
    %v141 = vld [vmem:[#allocation5 + $0x1bc] sm:$0x33]
    %v142 = vld [vmem:[#allocation5 + $0x1c4] sm:$0x3]
    %v143 = vld [vmem:[%s2] sm:$0x7]
    %v145 = vlaneseq
    %v146 = vshrl.u32 %v145, 7
    %v147 = vsub.s32 0, %v146
    %v148 = vrot.slane %v143, %v147
    %v149 = vlaneseq
    %v150 = vshrl.u32 %v149, 7
    %v151 = vsub.s32 1, %v150
    %v152 = vrot.slane %v143, %v151
    %v153 = vlaneseq
    %v154 = vshrl.u32 %v153, 7
    %v155 = vsub.s32 2, %v154
    %v156 = vrot.slane %v143, %v155
    %v236 = vunpack.c.l.b16 %v67
    %v237 = vunpack.c.h.b16 %v67
    %v238 = vunpack.c.l.b16 %v68
    %v239 = vunpack.c.l.b16 %v69
    %v240 = vunpack.c.h.b16 %v69
    %v241 = vunpack.c.l.b16 %v70
    %v242 = vunpack.c.l.b16 %v71
    %v243 = vunpack.c.h.b16 %v71
    %v244 = vunpack.c.l.b16 %v72
    %v245 = vunpack.c.l.b16 %v73
    %v246 = vunpack.c.h.b16 %v73
    %v247 = vunpack.c.l.b16 %v74
    %v248 = vunpack.c.l.b16 %v75
    %v249 = vunpack.c.h.b16 %v75
    %v250 = vunpack.c.l.b16 %v76
    %v251 = vunpack.c.l.b16 %v77
    %v252 = vunpack.c.h.b16 %v77
    %v253 = vunpack.c.l.b16 %v78
    %v254 = vunpack.c.l.b16 %v79
    %v255 = vunpack.c.h.b16 %v79
    %v256 = vunpack.c.l.b16 %v80
    %v257 = vunpack.c.l.b16 %v81
    %v258 = vunpack.c.h.b16 %v81
    %v259 = vunpack.c.l.b16 %v82
    %v260 = vunpack.c.l.b16 %v83
    %v261 = vunpack.c.h.b16 %v83
    %v262 = vunpack.c.l.b16 %v84
    %v263 = vunpack.c.l.b16 %v85
    %v264 = vunpack.c.h.b16 %v85
    %v265 = vunpack.c.l.b16 %v86
    %v266 = vunpack.c.l.b16 %v87
    %v267 = vunpack.c.h.b16 %v87
    %v268 = vunpack.c.l.b16 %v88
    %v269 = vunpack.c.l.b16 %v89
    %v270 = vunpack.c.h.b16 %v89
    %v271 = vunpack.c.l.b16 %v90
    %v272 = vunpack.c.l.b16 %v91
    %v273 = vunpack.c.h.b16 %v91
    %v274 = vunpack.c.l.b16 %v92
    %v275 = vunpack.c.l.b16 %v93
    %v276 = vunpack.c.h.b16 %v93
    %v277 = vunpack.c.l.b16 %v94
    %v278 = vunpack.c.l.b16 %v95
    %v279 = vunpack.c.h.b16 %v95
    %v280 = vunpack.c.l.b16 %v96
    %v281 = vunpack.c.l.b16 %v97
    %v282 = vunpack.c.h.b16 %v97
    %v283 = vunpack.c.l.b16 %v98
    %v284 = vunpack.c.l.b16 %v99
    %v285 = vunpack.c.h.b16 %v99
    %v286 = vunpack.c.l.b16 %v100
    %v287 = vunpack.c.l.b16 %v101
    %v288 = vunpack.c.h.b16 %v101
    %v289 = vunpack.c.l.b16 %v102
    %v290 = vunpack.c.l.b16 %v103
    %v291 = vunpack.c.h.b16 %v103
    %v292 = vunpack.c.l.b16 %v104
    %v293 = vunpack.c.l.b16 %v105
    %v294 = vunpack.c.h.b16 %v105
    %v295 = vunpack.c.l.b16 %v106
    %v296 = vunpack.c.l.b16 %v107
    %v297 = vunpack.c.h.b16 %v107
    %v298 = vunpack.c.l.b16 %v108
    %v299 = vunpack.c.l.b16 %v109
    %v300 = vunpack.c.h.b16 %v109
    %v301 = vunpack.c.l.b16 %v110
    %v302 = vunpack.c.l.b16 %v111
    %v303 = vunpack.c.h.b16 %v111
    %v304 = vunpack.c.l.b16 %v112
    %v305 = vunpack.c.l.b16 %v113
    %v306 = vunpack.c.h.b16 %v113
    %v307 = vunpack.c.l.b16 %v114
    %v308 = vunpack.c.l.b16 %v115
    %v309 = vunpack.c.h.b16 %v115
    %v310 = vunpack.c.l.b16 %v116
    %v311 = vunpack.c.l.b16 %v117
    %v312 = vunpack.c.h.b16 %v117
    %v313 = vunpack.c.l.b16 %v118
    %v314 = vunpack.c.l.b16 %v119
    %v315 = vunpack.c.h.b16 %v119
    %v316 = vunpack.c.l.b16 %v120
    %v317 = vunpack.c.l.b16 %v121
    %v318 = vunpack.c.h.b16 %v121
    %v319 = vunpack.c.l.b16 %v122
    %v320 = vunpack.c.l.b16 %v123
    %v321 = vunpack.c.h.b16 %v123
    %v322 = vunpack.c.l.b16 %v124
    %v323 = vunpack.c.l.b16 %v125
    %v324 = vunpack.c.h.b16 %v125
    %v325 = vunpack.c.l.b16 %v126
    %v326 = vunpack.c.l.b16 %v127
    %v327 = vunpack.c.h.b16 %v127
    %v328 = vunpack.c.l.b16 %v128
    %v329 = vunpack.c.l.b16 %v129
    %v330 = vunpack.c.h.b16 %v129
    %v331 = vunpack.c.l.b16 %v130
    %v332 = vunpack.c.l.b16 %v131
    %v333 = vunpack.c.h.b16 %v131
    %v334 = vunpack.c.l.b16 %v132
    %v335 = vunpack.c.l.b16 %v133
    %v336 = vunpack.c.h.b16 %v133
    %v337 = vunpack.c.l.b16 %v134
    %v338 = vunpack.c.l.b16 %v135
    %v339 = vunpack.c.h.b16 %v135
    %v340 = vunpack.c.l.b16 %v136
    %v341 = vunpack.c.l.b16 %v137
    %v342 = vunpack.c.h.b16 %v137
    %v343 = vunpack.c.l.b16 %v138
    %v344 = vunpack.c.l.b16 %v139
    %v345 = vunpack.c.h.b16 %v139
    %v346 = vunpack.c.l.b16 %v140
    %v347 = vunpack.c.l.b16 %v141
    %v348 = vunpack.c.h.b16 %v141
    %v349 = vunpack.c.l.b16 %v142
    %v350 = vpack.c.b16 %v239, %v236
    %v351 = vpack.c.b16 %v240, %v237
    %v352 = vpack.c.b16 %v241, %v238
    %v353 = vpack.c.b16 %v245, %v242
    %v354 = vpack.c.b16 %v246, %v243
    %v355 = vpack.c.b16 %v247, %v244
    %v356 = vpack.c.b16 %v251, %v248
    %v357 = vpack.c.b16 %v252, %v249
    %v358 = vpack.c.b16 %v253, %v250
    %v359 = vpack.c.b16 %v257, %v254
    %v360 = vpack.c.b16 %v258, %v255
    %v361 = vpack.c.b16 %v259, %v256
    %v362 = vpack.c.b16 %v263, %v260
    %v363 = vpack.c.b16 %v264, %v261
    %v364 = vpack.c.b16 %v265, %v262
    %v365 = vpack.c.b16 %v269, %v266
    %v366 = vpack.c.b16 %v270, %v267
    %v367 = vpack.c.b16 %v271, %v268
    %v368 = vpack.c.b16 %v275, %v272
    %v369 = vpack.c.b16 %v276, %v273
    %v370 = vpack.c.b16 %v277, %v274
    %v371 = vpack.c.b16 %v281, %v278
    %v372 = vpack.c.b16 %v282, %v279
    %v373 = vpack.c.b16 %v283, %v280
    %v374 = vpack.c.b16 %v287, %v284
    %v375 = vpack.c.b16 %v288, %v285
    %v376 = vpack.c.b16 %v289, %v286
    %v377 = vpack.c.b16 %v293, %v290
    %v378 = vpack.c.b16 %v294, %v291
    %v379 = vpack.c.b16 %v295, %v292
    %v380 = vpack.c.b16 %v299, %v296
    %v381 = vpack.c.b16 %v300, %v297
    %v382 = vpack.c.b16 %v301, %v298
    %v383 = vpack.c.b16 %v305, %v302
    %v384 = vpack.c.b16 %v306, %v303
    %v385 = vpack.c.b16 %v307, %v304
    %v386 = vpack.c.b16 %v311, %v308
    %v387 = vpack.c.b16 %v312, %v309
    %v388 = vpack.c.b16 %v313, %v310
    %v389 = vpack.c.b16 %v317, %v314
    %v390 = vpack.c.b16 %v318, %v315
    %v391 = vpack.c.b16 %v319, %v316
    %v392 = vpack.c.b16 %v323, %v320
    %v393 = vpack.c.b16 %v324, %v321
    %v394 = vpack.c.b16 %v325, %v322
    %v395 = vpack.c.b16 %v329, %v326
    %v396 = vpack.c.b16 %v330, %v327
    %v397 = vpack.c.b16 %v331, %v328
    %v398 = vpack.c.b16 %v335, %v332
    %v399 = vpack.c.b16 %v336, %v333
    %v400 = vpack.c.b16 %v337, %v334
    %v401 = vpack.c.b16 %v341, %v338
    %v402 = vpack.c.b16 %v342, %v339
    %v403 = vpack.c.b16 %v343, %v340
    %v404 = vpack.c.b16 %v347, %v344
    %v405 = vpack.c.b16 %v348, %v345
    %v406 = vpack.c.b16 %v349, %v346
    %vm461 = vcmask 359424
    %v463 = vsel %vm461, %v66, 0
    %vm465 = vcmask 1045504
    %v467 = vsel %vm465, %v404, 0
    %v470 = vsel %vm465, %v405, 0
    %v473 = vsel %vm465, %v406, 0
    %475 = vmatprep.subr.bf16.mxu0 %v351
    %476 = vmatpush1.bf16.msra.mxu0 %v350
    %477 = vmatprep.subr.bf16.mxu0 %v354
    %478 = vmatpush1.bf16.msra.mxu0 %v353
    %479 = vmatprep.subr.bf16.mxu0 %v357
    %480 = vmatpush1.bf16.msra.mxu0 %v356
    %481 = vmatprep.subr.bf16.mxu0 %v360
    %482 = vmatpush1.bf16.msra.mxu0 %v359
    %483 = vmatprep.subr.bf16.mxu0 %v363
    %484 = vmatpush1.bf16.msra.mxu0 %v362
    %485 = vmatprep.subr.bf16.mxu0 %v366
    %486 = vmatpush1.bf16.msra.mxu0 %v365
    %487 = vmatprep.subr.bf16.mxu0 %v369
    %488 = vmatpush1.bf16.msra.mxu0 %v368
    %489 = vmatprep.subr.bf16.mxu0 %v372
    %490 = vmatpush1.bf16.msra.mxu0 %v371
    %491 = vmatprep.subr.bf16.mxu0 %v375
    %492 = vmatpush1.bf16.msra.mxu0 %v374
    %493 = vmatprep.subr.bf16.mxu0 %v378
    %494 = vmatpush1.bf16.msra.mxu0 %v377
    %495 = vmatprep.subr.bf16.mxu0 %v381
    %496 = vmatpush1.bf16.msra.mxu0 %v380
    %497 = vmatprep.subr.bf16.mxu0 %v384
    %498 = vmatpush1.bf16.msra.mxu0 %v383
    %499 = vmatprep.subr.bf16.mxu0 %v387
    %500 = vmatpush1.bf16.msra.mxu0 %v386
    %501 = vmatprep.subr.bf16.mxu0 %v390
    %502 = vmatpush1.bf16.msra.mxu0 %v389
    %503 = vmatprep.subr.bf16.mxu0 %v393
    %504 = vmatpush1.bf16.msra.mxu0 %v392
    %505 = vmatprep.subr.bf16.mxu0 %v396
    %506 = vmatpush1.bf16.msra.mxu0 %v395
    %507 = vmatprep.mubr.bf16.mxu0 %v65
    %508 = vmatmul.mubr.bf16.gmra.mrb[0].mxu0 %v64
    %v509 = vpop.f32.mrb[0].mxu0
    %v510 = vadd.f32 %v148, %v509
    %v511 = vpop.f32.mrb[0].mxu0
    %v512 = vadd.f32 %v152, %v511
    %v513 = vpop.f32.mrb[0].mxu0
    %v514 = vpop.f32.mrb[0].mxu0
    %515 = vdwg.mxu0
    %516 = vmatprep.subr.bf16.mxu0 %v399
    %517 = vmatpush1.bf16.msra.mxu0 %v398
    %518 = vmatprep.subr.bf16.mxu0 %v402
    %519 = vmatpush1.bf16.msra.mxu0 %v401
    %520 = vmatprep.subr.bf16.mxu0 %v470
    %521 = vmatpush1.bf16.msra.mxu0 %v467
    %522 = vmatprep.subr.bf16.mxu0 0
    %523 = vmatpush1.bf16.msra.mxu0 0
    %524 = vmatprep.subr.bf16.mxu0 0
    %525 = vmatpush1.bf16.msra.mxu0 0
    %526 = vmatprep.subr.bf16.mxu0 0
    %527 = vmatpush1.bf16.msra.mxu0 0
    %528 = vmatprep.subr.bf16.mxu0 0
    %529 = vmatpush1.bf16.msra.mxu0 0
    %530 = vmatprep.subr.bf16.mxu0 0
    %531 = vmatpush1.bf16.msra.mxu0 0
    %532 = vmatprep.subr.bf16.mxu0 0
    %533 = vmatpush1.bf16.msra.mxu0 0
    %534 = vmatprep.subr.bf16.mxu0 0
    %535 = vmatpush1.bf16.msra.mxu0 0
    %536 = vmatprep.subr.bf16.mxu0 0
    %537 = vmatpush1.bf16.msra.mxu0 0
    %538 = vmatprep.subr.bf16.mxu0 0
    %539 = vmatpush1.bf16.msra.mxu0 0
    %540 = vmatprep.subr.bf16.mxu0 0
    %541 = vmatpush1.bf16.msra.mxu0 0
    %542 = vmatprep.subr.bf16.mxu0 0
    %543 = vmatpush1.bf16.msra.mxu0 0
    %544 = vmatprep.subr.bf16.mxu0 0
    %545 = vmatpush1.bf16.msra.mxu0 0
    %546 = vmatprep.subr.bf16.mxu0 0
    %547 = vmatpush1.bf16.msra.mxu0 0
    %548 = vmatprep.mubr.bf16.mxu0 0
    %549 = vmatmul.mubr.bf16.gmra.mrb[0].mxu0 %v463
    %v550 = vpop.f32.mrb[0].mxu0
    %v551 = vadd.f32 %v510, %v550
    %v552 = vpop.f32.mrb[0].mxu0
    %v553 = vadd.f32 %v512, %v552
    %v554 = vpop.f32.mrb[0].mxu0
    %v555 = vpop.f32.mrb[0].mxu0
    %556 = vdwg.mxu0
    %557 = vmatprep.subr.bf16.mxu0 0
    %558 = vmatpush1.bf16.msra.mxu0 %v352
    %559 = vmatprep.subr.bf16.mxu0 0
    %560 = vmatpush1.bf16.msra.mxu0 %v355
    %561 = vmatprep.subr.bf16.mxu0 0
    %562 = vmatpush1.bf16.msra.mxu0 %v358
    %563 = vmatprep.subr.bf16.mxu0 0
    %564 = vmatpush1.bf16.msra.mxu0 %v361
    %565 = vmatprep.subr.bf16.mxu0 0
    %566 = vmatpush1.bf16.msra.mxu0 %v364
    %567 = vmatprep.subr.bf16.mxu0 0
    %568 = vmatpush1.bf16.msra.mxu0 %v367
    %569 = vmatprep.subr.bf16.mxu0 0
    %570 = vmatpush1.bf16.msra.mxu0 %v370
    %571 = vmatprep.subr.bf16.mxu0 0
    %572 = vmatpush1.bf16.msra.mxu0 %v373
    %573 = vmatprep.subr.bf16.mxu0 0
    %574 = vmatpush1.bf16.msra.mxu0 %v376
    %575 = vmatprep.subr.bf16.mxu0 0
    %576 = vmatpush1.bf16.msra.mxu0 %v379
    %577 = vmatprep.subr.bf16.mxu0 0
    %578 = vmatpush1.bf16.msra.mxu0 %v382
    %579 = vmatprep.subr.bf16.mxu0 0
    %580 = vmatpush1.bf16.msra.mxu0 %v385
    %581 = vmatprep.subr.bf16.mxu0 0
    %582 = vmatpush1.bf16.msra.mxu0 %v388
    %583 = vmatprep.subr.bf16.mxu0 0
    %584 = vmatpush1.bf16.msra.mxu0 %v391
    %585 = vmatprep.subr.bf16.mxu0 0
    %586 = vmatpush1.bf16.msra.mxu0 %v394
    %587 = vmatprep.subr.bf16.mxu0 0
    %588 = vmatpush1.bf16.msra.mxu0 %v397
    %589 = vmatprep.mubr.bf16.mxu0 %v65
    %590 = vmatmul.mubr.bf16.gmra.mrb[0].mxu0 %v64
    %v591 = vpop.f32.mrb[0].mxu0
    %v592 = vadd.f32 %v156, %v591
    %v593 = vpop.f32.mrb[0].mxu0
    %v594 = vpop.f32.mrb[0].mxu0
    %v595 = vpop.f32.mrb[0].mxu0
    %596 = vdwg.mxu0
    %597 = vmatprep.subr.bf16.mxu0 0
    %598 = vmatpush1.bf16.msra.mxu0 %v400
    %599 = vmatprep.subr.bf16.mxu0 0
    %600 = vmatpush1.bf16.msra.mxu0 %v403
    %601 = vmatprep.subr.bf16.mxu0 0
    %602 = vmatpush1.bf16.msra.mxu0 %v473
    %603 = vmatprep.subr.bf16.mxu0 0
    %604 = vmatpush1.bf16.msra.mxu0 0
    %605 = vmatprep.subr.bf16.mxu0 0
    %606 = vmatpush1.bf16.msra.mxu0 0
    %607 = vmatprep.subr.bf16.mxu0 0
    %608 = vmatpush1.bf16.msra.mxu0 0
    %609 = vmatprep.subr.bf16.mxu0 0
    %610 = vmatpush1.bf16.msra.mxu0 0
    %611 = vmatprep.subr.bf16.mxu0 0
    %612 = vmatpush1.bf16.msra.mxu0 0
    %613 = vmatprep.subr.bf16.mxu0 0
    %614 = vmatpush1.bf16.msra.mxu0 0
    %615 = vmatprep.subr.bf16.mxu0 0
    %616 = vmatpush1.bf16.msra.mxu0 0
    %617 = vmatprep.subr.bf16.mxu0 0
    %618 = vmatpush1.bf16.msra.mxu0 0
    %619 = vmatprep.subr.bf16.mxu0 0
    %620 = vmatpush1.bf16.msra.mxu0 0
    %621 = vmatprep.subr.bf16.mxu0 0
    %622 = vmatpush1.bf16.msra.mxu0 0
    %623 = vmatprep.subr.bf16.mxu0 0
    %624 = vmatpush1.bf16.msra.mxu0 0
    %625 = vmatprep.subr.bf16.mxu0 0
    %626 = vmatpush1.bf16.msra.mxu0 0
    %627 = vmatprep.subr.bf16.mxu0 0
    %628 = vmatpush1.bf16.msra.mxu0 0
    %629 = vmatprep.mubr.bf16.mxu0 0
    %630 = vmatmul.mubr.bf16.gmra.mrb[0].mxu0 %v463
    %v631 = vpop.f32.mrb[0].mxu0
    %v632 = vadd.f32 %v592, %v631
    %v633 = vpop.f32.mrb[0].mxu0
    %v634 = vpop.f32.mrb[0].mxu0
    %v635 = vpop.f32.mrb[0].mxu0
    %636 = vdwg.mxu0
    %v637 = vtanh.pop %v551
    %v638 = vtanh.pop %v553
    %v639 = vtanh.pop %v632
    %v640 = vpack.c.bf16 %v637, %v637
    %v641 = vpack.c.bf16 %v638, %v638
    %v642 = vpack.c.bf16 %v639, %v639
    %v643 = vld [vmem:[#allocation7] sm:$0xf]
    %v644 = vld [vmem:[#allocation7 + $0x4] sm:$0xf]
    %v645 = vld [vmem:[#allocation7 + $0x8] sm:$0xf]
    %v646 = vld [vmem:[#allocation7 + $0xc] sm:$0xf]
    %v647 = vld [vmem:[#allocation7 + $0x10] sm:$0xf]
    %v648 = vld [vmem:[#allocation7 + $0x14] sm:$0xf]
    %v649 = vld [vmem:[#allocation7 + $0x18] sm:$0xf]
    %v650 = vld [vmem:[#allocation7 + $0x1c] sm:$0xf]
    %v651 = vld [vmem:[#allocation7 + $0x20] sm:$0xf]
    %v652 = vld [vmem:[#allocation7 + $0x24] sm:$0xf]
    %v653 = vld [vmem:[#allocation7 + $0x28] sm:$0xf]
    %v654 = vld [vmem:[#allocation7 + $0x2c] sm:$0xf]
    %v655 = vld [vmem:[#allocation7 + $0x30] sm:$0xf]
    %v656 = vld [vmem:[#allocation7 + $0x34] sm:$0xf]
    %v657 = vld [vmem:[#allocation7 + $0x38] sm:$0xf]
    %v658 = vld [vmem:[#allocation7 + $0x3c] sm:$0xf]
    %v659 = vld [vmem:[#allocation7 + $0x40] sm:$0xf]
    %v660 = vld [vmem:[#allocation7 + $0x44] sm:$0xf]
    %v661 = vld [vmem:[#allocation7 + $0x48] sm:$0xf]
    %v662 = vld [vmem:[#allocation7 + $0x4c] sm:$0xf]
    %v663 = vld [vmem:[#allocation7 + $0x50] sm:$0xf]
    %v664 = vld [vmem:[#allocation7 + $0x54] sm:$0xf]
    %v665 = vld [vmem:[#allocation7 + $0x58] sm:$0xf]
    %v666 = vld [vmem:[#allocation7 + $0x5c] sm:$0xf]
    %v667 = vld [vmem:[#allocation7 + $0x60] sm:$0xf]
    %v668 = vld [vmem:[#allocation7 + $0x64] sm:$0xf]
    %v669 = vld [vmem:[#allocation7 + $0x68] sm:$0xf]
    %v670 = vld [vmem:[#allocation7 + $0x6c] sm:$0xf]
    %v671 = vld [vmem:[#allocation7 + $0x70] sm:$0xf]
    %v672 = vld [vmem:[#allocation7 + $0x74] sm:$0xf]
    %v673 = vld [vmem:[#allocation7 + $0x78] sm:$0xf]
    %v674 = vld [vmem:[#allocation7 + $0x7c] sm:$0xf]
    %v675 = vld [vmem:[#allocation7 + $0x80] sm:$0xf]
    %v676 = vld [vmem:[#allocation7 + $0x84] sm:$0xf]
    %v677 = vld [vmem:[#allocation7 + $0x88] sm:$0xf]
    %v678 = vld [vmem:[#allocation7 + $0x8c] sm:$0xf]
    %v679 = vld [vmem:[#allocation7 + $0x90] sm:$0xf]
    %v680 = vld [vmem:[#allocation7 + $0x94] sm:$0xf]
    %v681 = vld [vmem:[#allocation7 + $0x98] sm:$0xf]
    %v682 = vld [vmem:[#allocation7 + $0x9c] sm:$0xf]
    %v683 = vld [vmem:[#allocation7 + $0xa0] sm:$0xf]
    %v684 = vld [vmem:[#allocation7 + $0xa4] sm:$0xf]
    %v685 = vld [vmem:[#allocation7 + $0xa8] sm:$0xf]
    %v686 = vld [vmem:[#allocation7 + $0xac] sm:$0xf]
    %v687 = vld [vmem:[#allocation7 + $0xb0] sm:$0xf]
    %v688 = vld [vmem:[#allocation7 + $0xb4] sm:$0xf]
    %v689 = vld [vmem:[#allocation7 + $0xb8] sm:$0xf]
    %v690 = vld [vmem:[#allocation7 + $0xbc] sm:$0xf]
    %v691 = vld [vmem:[%s4] sm:$0x1]
    %v693 = vlaneseq
    %v694 = vshrl.u32 %v693, 7
    %v695 = vsub.s32 0, %v694
    %v696 = vrot.slane %v691, %v695
    %v746 = vunpack.c.l.b16 %v643
    %v747 = vunpack.c.l.b16 %v644
    %v748 = vunpack.c.l.b16 %v645
    %v749 = vunpack.c.l.b16 %v646
    %v750 = vunpack.c.l.b16 %v647
    %v751 = vunpack.c.l.b16 %v648
    %v752 = vunpack.c.l.b16 %v649
    %v753 = vunpack.c.l.b16 %v650
    %v754 = vunpack.c.l.b16 %v651
    %v755 = vunpack.c.l.b16 %v652
    %v756 = vunpack.c.l.b16 %v653
    %v757 = vunpack.c.l.b16 %v654
    %v758 = vunpack.c.l.b16 %v655
    %v759 = vunpack.c.l.b16 %v656
    %v760 = vunpack.c.l.b16 %v657
    %v761 = vunpack.c.l.b16 %v658
    %v762 = vunpack.c.l.b16 %v659
    %v763 = vunpack.c.l.b16 %v660
    %v764 = vunpack.c.l.b16 %v661
    %v765 = vunpack.c.l.b16 %v662
    %v766 = vunpack.c.l.b16 %v663
    %v767 = vunpack.c.l.b16 %v664
    %v768 = vunpack.c.l.b16 %v665
    %v769 = vunpack.c.l.b16 %v666
    %v770 = vunpack.c.l.b16 %v667
    %v771 = vunpack.c.l.b16 %v668
    %v772 = vunpack.c.l.b16 %v669
    %v773 = vunpack.c.l.b16 %v670
    %v774 = vunpack.c.l.b16 %v671
    %v775 = vunpack.c.l.b16 %v672
    %v776 = vunpack.c.l.b16 %v673
    %v777 = vunpack.c.l.b16 %v674
    %v778 = vunpack.c.l.b16 %v675
    %v779 = vunpack.c.l.b16 %v676
    %v780 = vunpack.c.l.b16 %v677
    %v781 = vunpack.c.l.b16 %v678
    %v782 = vunpack.c.l.b16 %v679
    %v783 = vunpack.c.l.b16 %v680
    %v784 = vunpack.c.l.b16 %v681
    %v785 = vunpack.c.l.b16 %v682
    %v786 = vunpack.c.l.b16 %v683
    %v787 = vunpack.c.l.b16 %v684
    %v788 = vunpack.c.l.b16 %v685
    %v789 = vunpack.c.l.b16 %v686
    %v790 = vunpack.c.l.b16 %v687
    %v791 = vunpack.c.l.b16 %v688
    %v792 = vunpack.c.l.b16 %v689
    %v793 = vunpack.c.l.b16 %v690
    %v794 = vpack.c.b16 %v747, %v746
    %v795 = vpack.c.b16 %v749, %v748
    %v796 = vpack.c.b16 %v751, %v750
    %v797 = vpack.c.b16 %v753, %v752
    %v798 = vpack.c.b16 %v755, %v754
    %v799 = vpack.c.b16 %v757, %v756
    %v800 = vpack.c.b16 %v759, %v758
    %v801 = vpack.c.b16 %v761, %v760
    %v802 = vpack.c.b16 %v763, %v762
    %v803 = vpack.c.b16 %v765, %v764
    %v804 = vpack.c.b16 %v767, %v766
    %v805 = vpack.c.b16 %v769, %v768
    %v806 = vpack.c.b16 %v771, %v770
    %v807 = vpack.c.b16 %v773, %v772
    %v808 = vpack.c.b16 %v775, %v774
    %v809 = vpack.c.b16 %v777, %v776
    %v810 = vpack.c.b16 %v779, %v778
    %v811 = vpack.c.b16 %v781, %v780
    %v812 = vpack.c.b16 %v783, %v782
    %v813 = vpack.c.b16 %v785, %v784
    %v814 = vpack.c.b16 %v787, %v786
    %v815 = vpack.c.b16 %v789, %v788
    %v816 = vpack.c.b16 %v791, %v790
    %v817 = vpack.c.b16 %v793, %v792
    %842 = vmatprep.subr.bf16.mxu0 0
    %843 = vmatpush1.bf16.msra.mxu0 %v794
    %844 = vmatprep.subr.bf16.mxu0 0
    %845 = vmatpush1.bf16.msra.mxu0 %v795
    %846 = vmatprep.subr.bf16.mxu0 0
    %847 = vmatpush1.bf16.msra.mxu0 %v796
    %848 = vmatprep.subr.bf16.mxu0 0
    %849 = vmatpush1.bf16.msra.mxu0 %v797
    %850 = vmatprep.subr.bf16.mxu0 0
    %851 = vmatpush1.bf16.msra.mxu0 %v798
    %852 = vmatprep.subr.bf16.mxu0 0
    %853 = vmatpush1.bf16.msra.mxu0 %v799
    %854 = vmatprep.subr.bf16.mxu0 0
    %855 = vmatpush1.bf16.msra.mxu0 %v800
    %856 = vmatprep.subr.bf16.mxu0 0
    %857 = vmatpush1.bf16.msra.mxu0 %v801
    %858 = vmatprep.subr.bf16.mxu0 0
    %859 = vmatpush1.bf16.msra.mxu0 %v802
    %860 = vmatprep.subr.bf16.mxu0 0
    %861 = vmatpush1.bf16.msra.mxu0 %v803
    %862 = vmatprep.subr.bf16.mxu0 0
    %863 = vmatpush1.bf16.msra.mxu0 %v804
    %864 = vmatprep.subr.bf16.mxu0 0
    %865 = vmatpush1.bf16.msra.mxu0 %v805
    %866 = vmatprep.subr.bf16.mxu0 0
    %867 = vmatpush1.bf16.msra.mxu0 %v806
    %868 = vmatprep.subr.bf16.mxu0 0
    %869 = vmatpush1.bf16.msra.mxu0 %v807
    %870 = vmatprep.subr.bf16.mxu0 0
    %871 = vmatpush1.bf16.msra.mxu0 %v808
    %872 = vmatprep.subr.bf16.mxu0 0
    %873 = vmatpush1.bf16.msra.mxu0 %v809
    %874 = vmatprep.mubr.bf16.mxu0 %v641
    %875 = vmatmul.mubr.bf16.gmra.mrb[0].mxu0 %v640
    %v876 = vpop.f32.mrb[0].mxu0
    %v877 = vadd.f32 %v696, %v876
    %v878 = vpop.f32.mrb[0].mxu0
    %v879 = vpop.f32.mrb[0].mxu0
    %v880 = vpop.f32.mrb[0].mxu0
    %881 = vdwg.mxu0
    %882 = vmatprep.subr.bf16.mxu0 0
    %883 = vmatpush1.bf16.msra.mxu0 %v810
    %884 = vmatprep.subr.bf16.mxu0 0
    %885 = vmatpush1.bf16.msra.mxu0 %v811
    %886 = vmatprep.subr.bf16.mxu0 0
    %887 = vmatpush1.bf16.msra.mxu0 %v812
    %888 = vmatprep.subr.bf16.mxu0 0
    %889 = vmatpush1.bf16.msra.mxu0 %v813
    %890 = vmatprep.subr.bf16.mxu0 0
    %891 = vmatpush1.bf16.msra.mxu0 %v814
    %892 = vmatprep.subr.bf16.mxu0 0
    %893 = vmatpush1.bf16.msra.mxu0 %v815
    %894 = vmatprep.subr.bf16.mxu0 0
    %895 = vmatpush1.bf16.msra.mxu0 %v816
    %896 = vmatprep.subr.bf16.mxu0 0
    %897 = vmatpush1.bf16.msra.mxu0 %v817
    %898 = vmatprep.subr.bf16.mxu0 0
    %899 = vmatpush1.bf16.msra.mxu0 0
    %900 = vmatprep.subr.bf16.mxu0 0
    %901 = vmatpush1.bf16.msra.mxu0 0
    %902 = vmatprep.subr.bf16.mxu0 0
    %903 = vmatpush1.bf16.msra.mxu0 0
    %904 = vmatprep.subr.bf16.mxu0 0
    %905 = vmatpush1.bf16.msra.mxu0 0
    %906 = vmatprep.subr.bf16.mxu0 0
    %907 = vmatpush1.bf16.msra.mxu0 0
    %908 = vmatprep.subr.bf16.mxu0 0
    %909 = vmatpush1.bf16.msra.mxu0 0
    %910 = vmatprep.subr.bf16.mxu0 0
    %911 = vmatpush1.bf16.msra.mxu0 0
    %912 = vmatprep.subr.bf16.mxu0 0
    %913 = vmatpush1.bf16.msra.mxu0 0
    %914 = vmatprep.mubr.bf16.mxu0 0
    %915 = vmatmul.mubr.bf16.gmra.mrb[0].mxu0 %v642
    %v916 = vpop.f32.mrb[0].mxu0
    %v917 = vadd.f32 %v877, %v916
    %v918 = vpop.f32.mrb[0].mxu0
    %v919 = vpop.f32.mrb[0].mxu0
    %v920 = vpop.f32.mrb[0].mxu0
    %921 = vdwg.mxu0
    %v922 = vtanh.pop %v917
    %923 = vst [vmem:[#allocation8] sm:$0xff] %v922
    // Predicated region
    $region34: #{tpu_custom_call.1} parent=1 // pred_check
      _
    $region35: #{tpu_custom_call.1} parent=1 // pred_check_branch
      %925 = sbr.rel (0) target = $region37
    $region36: #{tpu_custom_call.1} parent=1 // pred_region
      %s927 = ssub.s32 128, 128
      %928 = vsyncadd [#allocation4], %s927
      %s930 = sshll.u32 [#allocation8], 4
      %s931 = int_to_ptr.vmem [resolvable:$true] %s930
      %933 = dma.vmem_to_hbm [thread:$0]  %s931, 128, %s5, [#allocation4]
    $region37: #{tpu_custom_call.1} parent=1 // pred_fallthru
      _
    // Predicated region
    $region38: #{tpu_custom_call.1} parent=1 // pred_check
      _
    $region39: #{tpu_custom_call.1} parent=1 // pred_check_branch
      %935 = sbr.rel (0) target = $region41
    $region40: #{tpu_custom_call.1} parent=1 // pred_region
      %936 = dma.done [#allocation4], 128
    $region41: #{tpu_custom_call.1} parent=1 // pred_fallthru
      _
    %937 = vsyncpa [#allocation3], 1
    %938 = vsyncpa [#allocation6], 1
    %939 = vsyncpa [#allocation4], 1

</llo_original>
